<compile_context>
chip_gen: v5e
topology: v5e:2x2
jax: 0.10.0
libtpu: 0.0.40
codegen_flags: <defaults>
</compile_context>

<pallas_src>
import jax
import jax.numpy as jnp
import numpy as np
from jax.experimental import pallas as pl
from jax.experimental.pallas import tpu as pltpu


def _round_up(a, b):
    return (a + b - 1) // b * b


def _vmem_budget_bytes():
    """~75% of per-core VMEM (headroom for compiler scratch); 48 MiB fallback."""
    try:
        cap = int(pltpu.get_tpu_info().vmem_capacity_bytes)
    except Exception:
        cap = 64 << 20  # v7x has the smallest VMEM (64 MiB/TC); be conservative
    return int(cap * 0.75)


def _choose_tiles(M, D, H, budget):
    """Pick (tm, th, n_h) so double-buffered tiles fit the VMEM budget."""
    # ---- th (hidden-dim tile) ---------------------------------------------
    # Double-buffered bf16 W1^T (D, th) + W2^T (th, D) slices: 2 * 2 * 2*D*th.
    w_budget = budget // 2
    if 8 * D * H <= w_budget or H % 128 != 0:
        # Weights fully resident -> constant weight block index -> single HBM
        # fetch for the whole kernel.  (H not a multiple of 128 only happens
        # for tiny models where residency is trivially fine.)
        th = H
    else:
        th = 128  # last resort; H % 128 == 0 guaranteed in this branch
        for align in (256, 128):
            divisors = [d for d in range(align, H + 1, align)
                        if H % d == 0 and 8 * D * d <= w_budget]
            if divisors:
                th = max(divisors)
                break
    n_h = H // th

    # ---- tm (token tile) ---------------------------------------------------
    act_budget = max(budget - 8 * D * th, 2 << 20)

    def act_bytes(tm):
        # x (bf16, double-buffered) + out (f32, double-buffered) + hidden temp
        return 2 * tm * D * 2 + 2 * tm * D * 4 + (3 * tm * th * 4) // 2

    # Keep >= 2 m-tiles so the "parallel" axis can shard across v7x's 2 TCs.
    tm_cap = max(16, _round_up(-(-M // 2), 16))
    tm = 16
    for cand in (1024, 512, 256, 128, 64, 32, 16):
        if cand > tm_cap or act_bytes(cand) > act_budget:
            continue
        Mp = _round_up(M, cand)
        if cand > 16 and (Mp - M) / Mp > 0.10:  # limit padded-row MXU waste
            continue
        tm = cand
        break
    return tm, th, n_h


def _ffn_kernel(x_ref, w1t_ref, b1_ref, w2t_ref, b2_ref, o_ref):
    """One (tm, D) token tile x one (th,) slice of the hidden dimension.

    x_ref   : (tm, D)  bf16   activations (resident across the h axis)
    w1t_ref : (D, th)  bf16   slice of W1^T
    b1_ref  : (1, th)  f32    slice of b1
    w2t_ref : (th, D)  bf16   slice of W2^T
    b2_ref  : (1, D)   f32    b2
    o_ref   : (tm, D)  f32    output tile; doubles as the accumulator
    """
    h_idx = pl.program_id(1)

    @pl.when(h_idx == 0)
    def _():
        o_ref[...] = jnp.zeros_like(o_ref)

    # Linear(D -> th slice) + bias + ReLU   (bf16 MXU inputs, f32 accumulate)
    hdn = jnp.dot(x_ref[...], w1t_ref[...],
                  preferred_element_type=jnp.float32) + b1_ref[...]
    hdn = jnp.maximum(hdn, 0.0)

    # Partial Linear(th slice -> D), accumulated in-place in the resident output
    o_ref[...] += jnp.dot(hdn.astype(jnp.bfloat16), w2t_ref[...],
                          preferred_element_type=jnp.float32)

    @pl.when(h_idx == pl.num_programs(1) - 1)
    def _():
        o_ref[...] += b2_ref[...]


def feedforward_pallas(x, w1, b1, w2, b2):
    """y = ReLU(x @ w1.T + b1) @ w2.T + b2   (Dropout = identity / eval mode).

    x : (..., D)
    w1: (H, D)   PyTorch nn.Linear weight layout, H = 4*D
    b1: (H,)
    w2: (D, H)
    b2: (D,)
    """
    orig_shape = x.shape
    D = orig_shape[-1]
    H = w1.shape[0]
    M = int(np.prod(orig_shape[:-1]))

    budget = _vmem_budget_bytes()
    tm, th, n_h = _choose_tiles(M, D, H, budget)

    # bf16 activations: half the x HBM traffic, no in-kernel cast.
    xf = x.reshape(M, D).astype(jnp.bfloat16)
    Mp = _round_up(M, tm)
    if Mp != M:
        xf = jnp.pad(xf, ((0, Mp - M), (0, 0)))

    # Pre-transposed bf16 weights: kernel computes y = x @ W with no transposes.
    w1t = w1.T.astype(jnp.bfloat16)                 # (D, H)
    w2t = w2.T.astype(jnp.bfloat16)                 # (H, D)
    b1r = b1.reshape(1, H).astype(jnp.float32)
    b2r = b2.reshape(1, D).astype(jnp.float32)

    out = pl.pallas_call(
        _ffn_kernel,
        out_shape=jax.ShapeDtypeStruct((Mp, D), jnp.float32),
        grid=(Mp // tm, n_h),
        in_specs=[
            pl.BlockSpec((tm, D), lambda m, h: (m, 0)),   # x tile (resident over h)
            pl.BlockSpec((D, th), lambda m, h: (0, h)),   # W1^T slice
            pl.BlockSpec((1, th), lambda m, h: (0, h)),   # b1 slice
            pl.BlockSpec((th, D), lambda m, h: (h, 0)),   # W2^T slice
            pl.BlockSpec((1, D), lambda m, h: (0, 0)),    # b2
        ],
        out_specs=pl.BlockSpec((tm, D), lambda m, h: (m, 0)),
        compiler_params=pltpu.CompilerParams(
            dimension_semantics=("parallel", "arbitrary"),
            vmem_limit_bytes=budget),
    )(xf, w1t, b1r, w2t, b2r)

    return out[:M].reshape(orig_shape).astype(x.dtype)


# ---------------- pure-JAX reference (for correctness check) ----------------
def feedforward_ref(x, w1, b1, w2, b2):
    hdn = jnp.maximum(x @ w1.T + b1, 0.0)
    return hdn @ w2.T + b2


if __name__ == "__main__":
    key = jax.random.PRNGKey(0)
    n_embed = 128                       # lane-dense (multiple of 128)
    B, T = 2, 16                        # 32 tokens -> 2 m-tiles of 16
    H = 4 * n_embed

    kx, k1, k2, k3, k4 = jax.random.split(key, 5)
    x = jax.random.normal(kx, (B, T, n_embed), dtype=jnp.float32)
    w1 = 0.05 * jax.random.normal(k1, (H, n_embed), dtype=jnp.float32)
    b1 = 0.10 * jax.random.normal(k2, (H,), dtype=jnp.float32)
    w2 = 0.05 * jax.random.normal(k3, (n_embed, H), dtype=jnp.float32)
    b2 = 0.10 * jax.random.normal(k4, (n_embed,), dtype=jnp.float32)

    out = feedforward_pallas(x, w1, b1, w2, b2)
    out = jax.block_until_ready(out)

    ref = feedforward_ref(x, w1, b1, w2, b2)
    # bf16 MXU inputs vs f32 reference -> moderate tolerance
    np.testing.assert_allclose(np.asarray(out), np.asarray(ref),
                               atol=2e-2, rtol=2e-2)
    print("KERNEL_OK")
</pallas_src>

<mosaic_0001>
module attributes {stable_mosaic.version = 11 : i64} {
  func.func @_ffn_kernel(%arg0: i32, %arg1: i32, %arg2: memref<16x128xbf16, #tpu.memory_space<vmem>>, %arg3: memref<128x512xbf16, #tpu.memory_space<vmem>>, %arg4: memref<1x512xf32, #tpu.memory_space<vmem>>, %arg5: memref<512x128xbf16, #tpu.memory_space<vmem>>, %arg6: memref<1x128xf32, #tpu.memory_space<vmem>>, %arg7: memref<16x128xf32, #tpu.memory_space<vmem>>) attributes {dimension_semantics = [#tpu.dimension_semantics<parallel>, #tpu.dimension_semantics<arbitrary>], iteration_bounds = array<i64: 2, 1>, scalar_prefetch = 0 : i64, scratch_operands = 0 : i64, tpu.core_type = #tpu.core_type<tc>, window_params = [{transform_indices = @transform_0, window_bounds = array<i64: 16, 128>}, {transform_indices = @transform_1, window_bounds = array<i64: 128, 512>}, {transform_indices = @transform_2, window_bounds = array<i64: 1, 512>}, {transform_indices = @transform_3, window_bounds = array<i64: 512, 128>}, {pipeline_mode = #tpu.pipeline_mode<synchronous>, transform_indices = @transform_4, window_bounds = array<i64: 1, 128>}, {transform_indices = @transform_5, window_bounds = array<i64: 16, 128>}]} {
    %c0_i32 = arith.constant 0 : i32
    %0 = arith.cmpi eq, %arg1, %c0_i32 : i32
    %1 = arith.extui %0 : i1 to i32
    %c0_i32_0 = arith.constant 0 : i32
    %2 = arith.cmpi ne, %1, %c0_i32_0 : i32
    scf.if %2 {
      %cst_16 = arith.constant 0.000000e+00 : f32
      %20 = vector.broadcast %cst_16 : f32 to vector<16x128xf32>
      %c0_17 = arith.constant 0 : index
      %c0_18 = arith.constant 0 : index
      %21 = vector.load %arg7[%c0_17, %c0_18] : memref<16x128xf32, #tpu.memory_space<vmem>>, vector<16x128xf32>
      tpu.vector_store %arg7[%c0_17, %c0_18], %20 {strides = array<i32>} : memref<16x128xf32, #tpu.memory_space<vmem>>, vector<16x128xf32>,
    } else {
    }
    %c0 = arith.constant 0 : index
    %c0_1 = arith.constant 0 : index
    %3 = vector.load %arg2[%c0, %c0_1] : memref<16x128xbf16, #tpu.memory_space<vmem>>, vector<16x128xbf16>
    %c0_2 = arith.constant 0 : index
    %c0_3 = arith.constant 0 : index
    %4 = vector.load %arg3[%c0_2, %c0_3] : memref<128x512xbf16, #tpu.memory_space<vmem>>, vector<128x512xbf16>
    %cst = arith.constant dense<0.000000e+00> : vector<16x512xf32>
    %5 = tpu.matmul %3, %4, %cst {dimension_numbers = #tpu.dot_dimension_numbers<[1], [0], [0], [1], [0, 0, 1, 1], [], []>} : vector<16x128xbf16>, vector<128x512xbf16>, vector<16x512xf32> -> vector<16x512xf32>
    %c0_4 = arith.constant 0 : index
    %c0_5 = arith.constant 0 : index
    %6 = vector.load %arg4[%c0_4, %c0_5] : memref<1x512xf32, #tpu.memory_space<vmem>>, vector<1x512xf32>
    %7 = vector.broadcast %6 : vector<1x512xf32> to vector<16x512xf32>
    %8 = arith.addf %5, %7 : vector<16x512xf32>
    %cst_6 = arith.constant 0.000000e+00 : f32
    %9 = vector.broadcast %cst_6 : f32 to vector<16x512xf32>
    %10 = arith.maximumf %8, %9 : vector<16x512xf32>
    %c0_7 = arith.constant 0 : index
    %c0_8 = arith.constant 0 : index
    %11 = vector.load %arg7[%c0_7, %c0_8] : memref<16x128xf32, #tpu.memory_space<vmem>>, vector<16x128xf32>
    %12 = arith.truncf %10 : vector<16x512xf32> to vector<16x512xbf16>
    %c0_9 = arith.constant 0 : index
    %c0_10 = arith.constant 0 : index
    %13 = vector.load %arg5[%c0_9, %c0_10] : memref<512x128xbf16, #tpu.memory_space<vmem>>, vector<512x128xbf16>
    %cst_11 = arith.constant dense<0.000000e+00> : vector<16x128xf32>
    %14 = tpu.matmul %12, %13, %cst_11 {dimension_numbers = #tpu.dot_dimension_numbers<[1], [0], [0], [1], [0, 0, 1, 1], [], []>} : vector<16x512xbf16>, vector<512x128xbf16>, vector<16x128xf32> -> vector<16x128xf32>
    %15 = arith.addf %11, %14 : vector<16x128xf32>
    %c0_12 = arith.constant 0 : index
    %c0_13 = arith.constant 0 : index
    %16 = vector.load %arg7[%c0_12, %c0_13] : memref<16x128xf32, #tpu.memory_space<vmem>>, vector<16x128xf32>
    tpu.vector_store %arg7[%c0_12, %c0_13], %15 {strides = array<i32>} : memref<16x128xf32, #tpu.memory_space<vmem>>, vector<16x128xf32>,
    %c0_i32_14 = arith.constant 0 : i32
    %17 = arith.cmpi eq, %arg1, %c0_i32_14 : i32
    %18 = arith.extui %17 : i1 to i32
    %c0_i32_15 = arith.constant 0 : i32
    %19 = arith.cmpi ne, %18, %c0_i32_15 : i32
    scf.if %19 {
      %c0_16 = arith.constant 0 : index
      %c0_17 = arith.constant 0 : index
      %20 = vector.load %arg7[%c0_16, %c0_17] : memref<16x128xf32, #tpu.memory_space<vmem>>, vector<16x128xf32>
      %c0_18 = arith.constant 0 : index
      %c0_19 = arith.constant 0 : index
      %21 = vector.load %arg6[%c0_18, %c0_19] : memref<1x128xf32, #tpu.memory_space<vmem>>, vector<1x128xf32>
      %22 = vector.broadcast %21 : vector<1x128xf32> to vector<16x128xf32>
      %23 = arith.addf %20, %22 : vector<16x128xf32>
      %c0_20 = arith.constant 0 : index
      %c0_21 = arith.constant 0 : index
      %24 = vector.load %arg7[%c0_20, %c0_21] : memref<16x128xf32, #tpu.memory_space<vmem>>, vector<16x128xf32>
      tpu.vector_store %arg7[%c0_20, %c0_21], %23 {strides = array<i32>} : memref<16x128xf32, #tpu.memory_space<vmem>>, vector<16x128xf32>,
    } else {
    }
    return
  }
  func.func @transform_0(%arg0: i32, %arg1: i32) -> (i32, i32) {
    %c0_i32 = arith.constant 0 : i32
    %c0_i32_0 = arith.constant 0 : i32
    return %arg0, %c0_i32 : i32, i32
  }
  func.func @transform_1(%arg0: i32, %arg1: i32) -> (i32, i32) {
    %c0_i32 = arith.constant 0 : i32
    %c0_i32_0 = arith.constant 0 : i32
    return %c0_i32, %arg1 : i32, i32
  }
  func.func @transform_2(%arg0: i32, %arg1: i32) -> (i32, i32) {
    %c0_i32 = arith.constant 0 : i32
    %c0_i32_0 = arith.constant 0 : i32
    return %c0_i32, %arg1 : i32, i32
  }
  func.func @transform_3(%arg0: i32, %arg1: i32) -> (i32, i32) {
    %c0_i32 = arith.constant 0 : i32
    %c0_i32_0 = arith.constant 0 : i32
    return %arg1, %c0_i32 : i32, i32
  }
  func.func @transform_4(%arg0: i32, %arg1: i32) -> (i32, i32) {
    %c0_i32 = arith.constant 0 : i32
    %c0_i32_0 = arith.constant 0 : i32
    %c0_i32_1 = arith.constant 0 : i32
    return %c0_i32, %c0_i32_0 : i32, i32
  }
  func.func @transform_5(%arg0: i32, %arg1: i32) -> (i32, i32) {
    %c0_i32 = arith.constant 0 : i32
    %c0_i32_0 = arith.constant 0 : i32
    return %arg0, %c0_i32 : i32, i32
  }
}

</mosaic_0001>

<llo_original>
// kernel: tpu_custom_call.1
$region0: #{tpu_custom_call.1}
  #allocation0 [shape = 'u32[]', space=smem, size = 0x4, offset = 0x4, fixed_abs, tag = 'smem constant byte address 0x4 - core index']
  #allocation1 [shape = 'u32[72,128]{1,0:T(1,128)}', space=vmem, size = 0x9000, scoped, tag = 'internal scratch']
  %s0 = inlined_call_operand.hbm [shape: bf16[32,128], index: 0, kind: input, shape index: {}]
  %s1 = inlined_call_operand.hbm [shape: bf16[128,512], index: 1, kind: input, shape index: {}]
  %s2 = inlined_call_operand.hbm [shape: f32[1,512], index: 2, kind: input, shape index: {}]
  %s3 = inlined_call_operand.hbm [shape: bf16[512,128], index: 3, kind: input, shape index: {}]
  %s4 = inlined_call_operand.vmem [shape: f32[1,128], index: 4, kind: input, shape index: {}]
  %s5 = inlined_call_operand.hbm [shape: f32[32,128], index: 5, kind: output, shape index: {}]
  %s6 = sld [smem:[#allocation0]]
  $region77: #{tpu_custom_call.1} parent=0
    _
  %s8 = ssub.s32 1, %s6
  %s9 = scalar_select 0, %s8, %s6
  $region1: #{tpu_custom_call.1} parent=0
    #allocation2 [shape = 'u8[8192]{0}', space=vmem, size = 0x2000, scoped, tag = 'input window, operand 0']
    #allocation3 [shape = 's32[2]{0}', space=sflag, size = 0x8, scoped, tag = 'scoped memory for tpu_custom_call.1']
    #allocation4 [shape = 's32[2]{0}', space=sflag, size = 0x8, scoped, tag = 'scoped memory for tpu_custom_call.1']
    #allocation5 [shape = 'u8[131072]{0}', space=vmem, size = 0x20000, scoped, tag = 'input window, operand 1, single buffered']
    #allocation6 [shape = 's32[1]{0}', space=sflag, size = 0x4, scoped, tag = 'scoped memory for tpu_custom_call.1']
    #allocation7 [shape = 'u8[2048]{0}', space=vmem, size = 0x800, scoped, tag = 'input window, operand 2, single buffered']
    #allocation8 [shape = 'u8[131072]{0}', space=vmem, size = 0x20000, scoped, tag = 'input window, operand 3, single buffered']
    #allocation9 [shape = 's32[1]{0}', space=sflag, size = 0x4, scoped, tag = 'scoped memory for tpu_custom_call.1']
    #allocation10 [shape = 'u8[16384]{0}', space=vmem, size = 0x4000, scoped, tag = 'output window, operand 0']
    %10 = vsyncpa [#allocation3], 0
    %s11 = scalar_lea.sflag [#allocation3], 1
    %12 = vsyncpa %s11, 0
    %13 = vsyncpa [#allocation6], 0
    %14 = vsyncpa [#allocation9], 0
    %15 = vsyncpa [#allocation4], 0
    %s16 = scalar_lea.sflag [#allocation4], 1
    %17 = vsyncpa %s16, 0
    loop: start=0, step=1, limit=4
    $region2: #{tpu_custom_call.1} parent=1 // loop_pre_header
      _
    $region3: #{tpu_custom_call.1} parent=1 // loop_header
      %s19 = sphi 0, %s23
      %p20 = scmp.ge.s32.totalorder %s19, 4
      %s26 = sphi 0, %s38
      %s27 = sphi 0, %s34
      %s28 = sphi 0, %s26
      %s29 = sphi 0, %s27
      %s30 = sphi 0, %s28
      %s31 = sphi 0, %s29
      %s41 = sphi 0, %s43
      %s44 = sphi 0, %s41
      %s45 = sphi 0, %s44
      %s61 = sphi 0, %s45
      %s67 = sphi 0, %s69
      %s70 = sphi 0, %s67
      %s71 = sphi 0, %s70
      %s87 = sphi 0, %s71
      %s93 = sphi 0, %s95
      %s96 = sphi 0, %s93
      %s97 = sphi 0, %s96
      %s113 = sphi 0, %s97
      %s119 = sphi 0, %s121
      %s122 = sphi 0, %s119
      %s123 = sphi 0, %s122
      %s139 = sphi 0, %s123
      %s143 = sphi 0, %s143
      %s145 = sphi 0, %s143
      %s146 = sphi 0, %s145
      %s160 = sphi 0, %s146
      %s166 = sphi 0, %s168
      %s169 = sphi 0, %s166
      %s170 = sphi 0, %s169
      %s186 = sphi 0, %s170
    $region4: #{tpu_custom_call.1} parent=1 // loop_header_branch
      %22 = sbr.rel (%p20) target = $region8
    $region5: #{tpu_custom_call.1} parent=1 // loop_body
      %s24 = ssub.s32 %s19, 1
      %s25 = ssub.s32 %s19, 2
      %s32 = sadd.s32 1, %s27
      %p33 = scmp.ge.s32.totalorder %s32, 1
      %s34 = scalar_select %p33, 0, %s32
      %s35 = sadd.s32 1, %s26
      %s36 = scalar_select %p33, %s35, %s26
      %p37 = scmp.ge.s32.totalorder %s36, 2
      %s38 = scalar_select %p37, 0, %s36
      %s39 = ssub.s32 %s26, %s38
      %p40 = scmp.eq.s32.totalorder %s39, 0
      %s42 = sadd.s32 %s41, 1
      %s43 = scalar_select %p40, %s41, %s42
      %p46 = pneg %p40
      %p47 = scmp.eq.s32.totalorder %s19, 1
      %p48 = por %p46, %p47
      %p49 = scmp.ne.s32.totalorder %s41, %s44
      %p50 = scmp.eq.s32.totalorder %s19, 0
      %p51 = por %p49, %p50
      %p52 = scmp.ne.s32.totalorder %s41, %s44
      %p53 = scmp.eq.s32.totalorder %s24, 1
      %p54 = por %p52, %p53
      %p55 = scmp.ne.s32.totalorder %s44, %s45
      %p56 = scmp.eq.s32.totalorder %s24, 0
      %p57 = por %p55, %p56
      %p58 = scmp.ne.s32.totalorder %s44, %s45
      %p59 = scmp.eq.s32.totalorder %s25, 1
      %p60 = por %p58, %p59
      %p62 = scmp.ne.s32.totalorder %s45, %s61
      %p63 = scmp.eq.s32.totalorder %s25, 0
      %p64 = por %p62, %p63
      %s65 = ssub.s32 %s27, %s34
      %p66 = scmp.eq.s32.totalorder %s65, 0
      %s68 = sadd.s32 %s67, 1
      %s69 = scalar_select %p66, %s67, %s68
      %p72 = pneg %p66
      %p73 = scmp.eq.s32.totalorder %s19, 1
      %p74 = por %p72, %p73
      %p75 = scmp.ne.s32.totalorder %s67, %s70
      %p76 = scmp.eq.s32.totalorder %s19, 0
      %p77 = por %p75, %p76
      %p78 = scmp.ne.s32.totalorder %s67, %s70
      %p79 = scmp.eq.s32.totalorder %s24, 1
      %p80 = por %p78, %p79
      %p81 = scmp.ne.s32.totalorder %s70, %s71
      %p82 = scmp.eq.s32.totalorder %s24, 0
      %p83 = por %p81, %p82
      %p84 = scmp.ne.s32.totalorder %s70, %s71
      %p85 = scmp.eq.s32.totalorder %s25, 1
      %p86 = por %p84, %p85
      %p88 = scmp.ne.s32.totalorder %s71, %s87
      %p89 = scmp.eq.s32.totalorder %s25, 0
      %p90 = por %p88, %p89
      %s91 = ssub.s32 %s27, %s34
      %p92 = scmp.eq.s32.totalorder %s91, 0
      %s94 = sadd.s32 %s93, 1
      %s95 = scalar_select %p92, %s93, %s94
      %p98 = pneg %p92
      %p99 = scmp.eq.s32.totalorder %s19, 1
      %p100 = por %p98, %p99
      %p101 = scmp.ne.s32.totalorder %s93, %s96
      %p102 = scmp.eq.s32.totalorder %s19, 0
      %p103 = por %p101, %p102
      %p104 = scmp.ne.s32.totalorder %s93, %s96
      %p105 = scmp.eq.s32.totalorder %s24, 1
      %p106 = por %p104, %p105
      %p107 = scmp.ne.s32.totalorder %s96, %s97
      %p108 = scmp.eq.s32.totalorder %s24, 0
      %p109 = por %p107, %p108
      %p110 = scmp.ne.s32.totalorder %s96, %s97
      %p111 = scmp.eq.s32.totalorder %s25, 1
      %p112 = por %p110, %p111
      %p114 = scmp.ne.s32.totalorder %s97, %s113
      %p115 = scmp.eq.s32.totalorder %s25, 0
      %p116 = por %p114, %p115
      %s117 = ssub.s32 %s27, %s34
      %p118 = scmp.eq.s32.totalorder %s117, 0
      %s120 = sadd.s32 %s119, 1
      %s121 = scalar_select %p118, %s119, %s120
      %p124 = pneg %p118
      %p125 = scmp.eq.s32.totalorder %s19, 1
      %p126 = por %p124, %p125
      %p127 = scmp.ne.s32.totalorder %s119, %s122
      %p128 = scmp.eq.s32.totalorder %s19, 0
      %p129 = por %p127, %p128
      %p130 = scmp.ne.s32.totalorder %s119, %s122
      %p131 = scmp.eq.s32.totalorder %s24, 1
      %p132 = por %p130, %p131
      %p133 = scmp.ne.s32.totalorder %s122, %s123
      %p134 = scmp.eq.s32.totalorder %s24, 0
      %p135 = por %p133, %p134
      %p136 = scmp.ne.s32.totalorder %s122, %s123
      %p137 = scmp.eq.s32.totalorder %s25, 1
      %p138 = por %p136, %p137
      %p140 = scmp.ne.s32.totalorder %s123, %s139
      %p141 = scmp.eq.s32.totalorder %s25, 0
      %p142 = por %p140, %p141
      %s144 = sadd.s32 %s143, 1
      %p147 = scmp.eq.s32.totalorder %s19, 1
      %p148 = scmp.ne.s32.totalorder %s143, %s145
      %p149 = scmp.eq.s32.totalorder %s19, 0
      %p150 = por %p148, %p149
      %p151 = scmp.ne.s32.totalorder %s143, %s145
      %p152 = scmp.eq.s32.totalorder %s24, 1
      %p153 = por %p151, %p152
      %p154 = scmp.ne.s32.totalorder %s145, %s146
      %p155 = scmp.eq.s32.totalorder %s24, 0
      %p156 = por %p154, %p155
      %p157 = scmp.ne.s32.totalorder %s145, %s146
      %p158 = scmp.eq.s32.totalorder %s25, 1
      %p159 = por %p157, %p158
      %p161 = scmp.ne.s32.totalorder %s146, %s160
      %p162 = scmp.eq.s32.totalorder %s25, 0
      %p163 = por %p161, %p162
      %s164 = ssub.s32 %s26, %s38
      %p165 = scmp.eq.s32.totalorder %s164, 0
      %s167 = sadd.s32 %s166, 1
      %s168 = scalar_select %p165, %s166, %s167
      %p171 = pneg %p165
      %p172 = scmp.eq.s32.totalorder %s19, 1
      %p173 = por %p171, %p172
      %p174 = scmp.ne.s32.totalorder %s166, %s169
      %p175 = scmp.eq.s32.totalorder %s19, 0
      %p176 = por %p174, %p175
      %p177 = scmp.ne.s32.totalorder %s166, %s169
      %p178 = scmp.eq.s32.totalorder %s24, 1
      %p179 = por %p177, %p178
      %p180 = scmp.ne.s32.totalorder %s169, %s170
      %p181 = scmp.eq.s32.totalorder %s24, 0
      %p182 = por %p180, %p181
      %p183 = scmp.ne.s32.totalorder %s169, %s170
      %p184 = scmp.eq.s32.totalorder %s25, 1
      %p185 = por %p183, %p184
      %p187 = scmp.ne.s32.totalorder %s170, %s186
      %p188 = scmp.eq.s32.totalorder %s25, 0
      %p189 = por %p187, %p188
      %p190 = scmp.le.s32.totalorder 1, %s19
      %p191 = scmp.lt.s32.totalorder %s19, 3
      %p192 = pnand %p190, %p191
      %p193 = pneg %p192
      // Predicated region
      $region9: #{tpu_custom_call.1} parent=5 // pred_check
        _
      $region10: #{tpu_custom_call.1} parent=5 // pred_check_branch
        %195 = sbr.rel (%p192) target = $region12
      $region11: #{tpu_custom_call.1} parent=5 // pred_region
        %s196 = ssub.s32 %s19, 1
        // Predicated region
        $region13: #{tpu_custom_call.1} parent=11 // pred_check
          %p197 = pneg %p83
        $region14: #{tpu_custom_call.1} parent=11 // pred_check_branch
          %199 = sbr.rel (%p197) target = $region16
        $region15: #{tpu_custom_call.1} parent=11 // pred_region
          %s200 = smul.u32 4, %s29
          %202 = vsyncadd [#allocation6], 0
          %s203 = smul.addr %s200, 4
          %s204 = scalar_lea.hbm %s1, %s203
          %s205 = sshll.u32 %s204, 4
          %s206 = int_to_ptr.hbm [resolvable:$true] %s205
          %s207 = sshll.u32 [#allocation5], 4
          %s208 = int_to_ptr.vmem [resolvable:$true] %s207
          %213 = dma.hbm_to_vmem [thread:$0]  %s206, 4096, %s208, [#allocation6], 256, 256, 16
        $region16: #{tpu_custom_call.1} parent=11 // pred_fallthru
          _
        // Predicated region
        $region17: #{tpu_custom_call.1} parent=11 // pred_check
          %p214 = pneg %p109
        $region18: #{tpu_custom_call.1} parent=11 // pred_check_branch
          %216 = sbr.rel (%p214) target = $region20
        $region19: #{tpu_custom_call.1} parent=11 // pred_region
          %s217 = smul.u32 4, %s29
          %219 = vsyncadd [#allocation6], 0
          %s220 = scalar_lea.hbm %s2, %s217
          %s222 = sshll.u32 %s220, 4
          %s223 = int_to_ptr.hbm [resolvable:$true] %s222
          %s224 = sshll.u32 [#allocation7], 4
          %s225 = int_to_ptr.vmem [resolvable:$true] %s224
          %227 = dma.hbm_to_vmem [thread:$0]  %s223, 64, %s225, [#allocation6]
        $region20: #{tpu_custom_call.1} parent=11 // pred_fallthru
          _
        // Predicated region
        $region21: #{tpu_custom_call.1} parent=11 // pred_check
          %p228 = pneg %p135
        $region22: #{tpu_custom_call.1} parent=11 // pred_check_branch
          %230 = sbr.rel (%p228) target = $region24
        $region23: #{tpu_custom_call.1} parent=11 // pred_region
          %s231 = smul.u32 64, %s29
          %233 = vsyncadd [#allocation9], 0
          %s234 = smul.addr %s231, 4
          %s235 = scalar_lea.hbm %s3, %s234
          %s236 = sshll.u32 %s235, 4
          %s237 = int_to_ptr.hbm [resolvable:$true] %s236
          %s238 = sshll.u32 [#allocation8], 4
          %s239 = int_to_ptr.vmem [resolvable:$true] %s238
          %244 = dma.hbm_to_vmem [thread:$0]  %s237, 4096, %s239, [#allocation9], 64, 64, 4
        $region24: #{tpu_custom_call.1} parent=11 // pred_fallthru
          _
        // Predicated region
        $region25: #{tpu_custom_call.1} parent=11 // pred_check
          %p245 = pneg %p156
        $region26: #{tpu_custom_call.1} parent=11 // pred_check_branch
          %247 = sbr.rel (%p245) target = $region28
        $region27: #{tpu_custom_call.1} parent=11 // pred_region
          _
        $region28: #{tpu_custom_call.1} parent=11 // pred_fallthru
          _
      $region12: #{tpu_custom_call.1} parent=5 // pred_fallthru
        _
      %p248 = scmp.lt.s32.totalorder %s19, 2
      // Predicated region
      $region29: #{tpu_custom_call.1} parent=5 // pred_check
        %p249 = pneg %p248
      $region30: #{tpu_custom_call.1} parent=5 // pred_check_branch
        %251 = sbr.rel (%p249) target = $region32
      $region31: #{tpu_custom_call.1} parent=5 // pred_region
        // Predicated region
        $region33: #{tpu_custom_call.1} parent=31 // pred_check
          %p252 = pneg %p51
        $region34: #{tpu_custom_call.1} parent=31 // pred_check_branch
          %254 = sbr.rel (%p252) target = $region36
        $region35: #{tpu_custom_call.1} parent=31 // pred_region
          %s255 = sand.u32 %s41, 1
          %s256 = scalar_lea.sflag [#allocation3], %s255
          %s257 = sand.u32 %s41, 1
          %s258 = smul.addr %s257, 8
          %s259 = scalar_lea.vmem [#allocation2], %s258
          %s260 = smul.u32 2, %s26
          %262 = vsyncadd %s256, 0
          %s263 = smul.addr %s260, 4
          %s264 = scalar_lea.hbm %s0, %s263
          %s265 = sshll.u32 %s264, 4
          %s266 = int_to_ptr.hbm [resolvable:$true] %s265
          %s267 = sshll.u32 %s259, 4
          %s268 = int_to_ptr.vmem [resolvable:$true] %s267
          %273 = dma.hbm_to_vmem [thread:$0]  %s266, 128, %s268, %s256, 64, 64, 4
        $region36: #{tpu_custom_call.1} parent=31 // pred_fallthru
          _
      $region32: #{tpu_custom_call.1} parent=5 // pred_fallthru
        _
      %p274 = scmp.le.s32.totalorder 1, %s19
      %p275 = scmp.lt.s32.totalorder %s19, 3
      %p276 = pnand %p274, %p275
      %p277 = pneg %p276
      // Predicated region
      $region37: #{tpu_custom_call.1} parent=5 // pred_check
        _
      $region38: #{tpu_custom_call.1} parent=5 // pred_check_branch
        %279 = sbr.rel (%p276) target = $region40
      $region39: #{tpu_custom_call.1} parent=5 // pred_region
        %s280 = ssub.s32 %s19, 1
        %s281 = sand.u32 %s44, 1
        %s282 = scalar_lea.sflag [#allocation3], %s281
        %s283 = sand.u32 %s44, 1
        %s284 = smul.addr %s283, 8
        %s285 = scalar_lea.vmem [#allocation2], %s284
        // Predicated region
        $region41: #{tpu_custom_call.1} parent=39 // pred_check
          %p286 = pneg %p57
        $region42: #{tpu_custom_call.1} parent=39 // pred_check_branch
          %288 = sbr.rel (%p286) target = $region44
        $region43: #{tpu_custom_call.1} parent=39 // pred_region
          %290 = dma.done %s282, 128
        $region44: #{tpu_custom_call.1} parent=39 // pred_fallthru
          _
        // Predicated region
        $region45: #{tpu_custom_call.1} parent=39 // pred_check
          %p291 = pneg %p83
        $region46: #{tpu_custom_call.1} parent=39 // pred_check_branch
          %293 = sbr.rel (%p291) target = $region48
        $region47: #{tpu_custom_call.1} parent=39 // pred_region
          %295 = dma.done [#allocation6], 4096
        $region48: #{tpu_custom_call.1} parent=39 // pred_fallthru
          _
        // Predicated region
        $region49: #{tpu_custom_call.1} parent=39 // pred_check
          %p296 = pneg %p109
        $region50: #{tpu_custom_call.1} parent=39 // pred_check_branch
          %298 = sbr.rel (%p296) target = $region52
        $region51: #{tpu_custom_call.1} parent=39 // pred_region
          %300 = dma.done [#allocation6], 64
        $region52: #{tpu_custom_call.1} parent=39 // pred_fallthru
          _
        // Predicated region
        $region53: #{tpu_custom_call.1} parent=39 // pred_check
          %p301 = pneg %p135
        $region54: #{tpu_custom_call.1} parent=39 // pred_check_branch
          %303 = sbr.rel (%p301) target = $region56
        $region55: #{tpu_custom_call.1} parent=39 // pred_region
          %305 = dma.done [#allocation9], 4096
        $region56: #{tpu_custom_call.1} parent=39 // pred_fallthru
          _
        %s306 = sand.u32 %s44, 1
        %s307 = scalar_lea.sflag [#allocation3], %s306
        %s308 = sand.u32 %s44, 1
        %s309 = smul.addr %s308, 8
        %s310 = scalar_lea.vmem [#allocation2], %s309
        %p311 = pneg %p57
        %p312 = pneg %p54
        %p313 = pneg %p83
        %p314 = pneg %p80
        %p315 = pneg %p109
        %p316 = pneg %p106
        %p317 = pneg %p135
        %p318 = pneg %p132
        %p319 = pneg %p156
        %p320 = pneg %p153
        %p321 = pneg %p182
        %p322 = pneg %p179
        %s323 = sand.u32 %s169, 1
        %s324 = scalar_lea.sflag [#allocation4], %s323
        %s325 = sand.u32 %s169, 1
        %s326 = smul.addr %s325, 16
        %s327 = scalar_lea.vmem [#allocation10], %s326
        %s328 = smul.u32 2, %s28
        %s329 = smul.u32 4, %s29
        %s330 = smul.u32 4, %s29
        %s331 = smul.u32 64, %s29
        %s332 = smul.u32 2, %s28
        %p333 = scmp.eq.s32.totalorder %s29, 0
        // Predicated region
        $region57: #{tpu_custom_call.1} parent=39 // pred_check
          %p334 = pneg %p333
        $region58: #{tpu_custom_call.1} parent=39 // pred_check_branch
          %336 = sbr.rel (%p334) target = $region60
        $region59: #{tpu_custom_call.1} parent=39 // pred_region
          %337 = vst [vmem:[%s327] sm:$0xff] 0.0
          %338 = vst [vmem:[%s327 + $0x8] sm:$0xff] 0.0
        $region60: #{tpu_custom_call.1} parent=39 // pred_fallthru
          _
        %v339 = vld [vmem:[%s285] sm:$0xf]
        %v340 = vld [vmem:[%s285 + $0x4] sm:$0xf]
        %v341 = vld [vmem:[#allocation5] sm:$0xff]
        %v342 = vld [vmem:[#allocation5 + $0x8] sm:$0xff]
        %v343 = vld [vmem:[#allocation5 + $0x10] sm:$0xff]
        %v344 = vld [vmem:[#allocation5 + $0x18] sm:$0xff]
        %v345 = vld [vmem:[#allocation5 + $0x20] sm:$0xff]
        %v346 = vld [vmem:[#allocation5 + $0x28] sm:$0xff]
        %v347 = vld [vmem:[#allocation5 + $0x30] sm:$0xff]
        %v348 = vld [vmem:[#allocation5 + $0x38] sm:$0xff]
        %v349 = vld [vmem:[#allocation5 + $0x40] sm:$0xff]
        %v350 = vld [vmem:[#allocation5 + $0x48] sm:$0xff]
        %v351 = vld [vmem:[#allocation5 + $0x50] sm:$0xff]
        %v352 = vld [vmem:[#allocation5 + $0x58] sm:$0xff]
        %v353 = vld [vmem:[#allocation5 + $0x60] sm:$0xff]
        %v354 = vld [vmem:[#allocation5 + $0x68] sm:$0xff]
        %v355 = vld [vmem:[#allocation5 + $0x70] sm:$0xff]
        %v356 = vld [vmem:[#allocation5 + $0x78] sm:$0xff]
        %v357 = vld [vmem:[#allocation5 + $0x80] sm:$0xff]
        %v358 = vld [vmem:[#allocation5 + $0x88] sm:$0xff]
        %v359 = vld [vmem:[#allocation5 + $0x90] sm:$0xff]
        %v360 = vld [vmem:[#allocation5 + $0x98] sm:$0xff]
        %v361 = vld [vmem:[#allocation5 + $0xa0] sm:$0xff]
        %v362 = vld [vmem:[#allocation5 + $0xa8] sm:$0xff]
        %v363 = vld [vmem:[#allocation5 + $0xb0] sm:$0xff]
        %v364 = vld [vmem:[#allocation5 + $0xb8] sm:$0xff]
        %v365 = vld [vmem:[#allocation5 + $0xc0] sm:$0xff]
        %v366 = vld [vmem:[#allocation5 + $0xc8] sm:$0xff]
        %v367 = vld [vmem:[#allocation5 + $0xd0] sm:$0xff]
        %v368 = vld [vmem:[#allocation5 + $0xd8] sm:$0xff]
        %v369 = vld [vmem:[#allocation5 + $0xe0] sm:$0xff]
        %v370 = vld [vmem:[#allocation5 + $0xe8] sm:$0xff]
        %v371 = vld [vmem:[#allocation5 + $0xf0] sm:$0xff]
        %v372 = vld [vmem:[#allocation5 + $0xf8] sm:$0xff]
        %v373 = vld [vmem:[#allocation7] sm:$0xf]
        %v375 = vperm.slane %v373, 0
        %v376 = vperm.slane %v373, 1
        %v377 = vperm.slane %v373, 2
        %v378 = vperm.slane %v373, 3
        %v385 = vunpack.c.l.b16 %v339
        %v386 = vunpack.c.l.b16 %v340
        %v387 = vpack.c.b16 %v386, %v385
        %v421 = vunpack.c.l.b16 %v341
        %v422 = vunpack.c.h.b16 %v341
        %v423 = vunpack.c.l.b16 %v342
        %v424 = vunpack.c.h.b16 %v342
        %v425 = vunpack.c.l.b16 %v343
        %v426 = vunpack.c.h.b16 %v343
        %v427 = vunpack.c.l.b16 %v344
        %v428 = vunpack.c.h.b16 %v344
        %v429 = vunpack.c.l.b16 %v345
        %v430 = vunpack.c.h.b16 %v345
        %v431 = vunpack.c.l.b16 %v346
        %v432 = vunpack.c.h.b16 %v346
        %v433 = vunpack.c.l.b16 %v347
        %v434 = vunpack.c.h.b16 %v347
        %v435 = vunpack.c.l.b16 %v348
        %v436 = vunpack.c.h.b16 %v348
        %v437 = vunpack.c.l.b16 %v349
        %v438 = vunpack.c.h.b16 %v349
        %v439 = vunpack.c.l.b16 %v350
        %v440 = vunpack.c.h.b16 %v350
        %v441 = vunpack.c.l.b16 %v351
        %v442 = vunpack.c.h.b16 %v351
        %v443 = vunpack.c.l.b16 %v352
        %v444 = vunpack.c.h.b16 %v352
        %v445 = vunpack.c.l.b16 %v353
        %v446 = vunpack.c.h.b16 %v353
        %v447 = vunpack.c.l.b16 %v354
        %v448 = vunpack.c.h.b16 %v354
        %v449 = vunpack.c.l.b16 %v355
        %v450 = vunpack.c.h.b16 %v355
        %v451 = vunpack.c.l.b16 %v356
        %v452 = vunpack.c.h.b16 %v356
        %v453 = vunpack.c.l.b16 %v357
        %v454 = vunpack.c.h.b16 %v357
        %v455 = vunpack.c.l.b16 %v358
        %v456 = vunpack.c.h.b16 %v358
        %v457 = vunpack.c.l.b16 %v359
        %v458 = vunpack.c.h.b16 %v359
        %v459 = vunpack.c.l.b16 %v360
        %v460 = vunpack.c.h.b16 %v360
        %v461 = vunpack.c.l.b16 %v361
        %v462 = vunpack.c.h.b16 %v361
        %v463 = vunpack.c.l.b16 %v362
        %v464 = vunpack.c.h.b16 %v362
        %v465 = vunpack.c.l.b16 %v363
        %v466 = vunpack.c.h.b16 %v363
        %v467 = vunpack.c.l.b16 %v364
        %v468 = vunpack.c.h.b16 %v364
        %v469 = vunpack.c.l.b16 %v365
        %v470 = vunpack.c.h.b16 %v365
        %v471 = vunpack.c.l.b16 %v366
        %v472 = vunpack.c.h.b16 %v366
        %v473 = vunpack.c.l.b16 %v367
        %v474 = vunpack.c.h.b16 %v367
        %v475 = vunpack.c.l.b16 %v368
        %v476 = vunpack.c.h.b16 %v368
        %v477 = vunpack.c.l.b16 %v369
        %v478 = vunpack.c.h.b16 %v369
        %v479 = vunpack.c.l.b16 %v370
        %v480 = vunpack.c.h.b16 %v370
        %v481 = vunpack.c.l.b16 %v371
        %v482 = vunpack.c.h.b16 %v371
        %v483 = vunpack.c.l.b16 %v372
        %v484 = vunpack.c.h.b16 %v372
        %v485 = vpack.c.b16 %v425, %v421
        %v486 = vpack.c.b16 %v426, %v422
        %v487 = vpack.c.b16 %v427, %v423
        %v488 = vpack.c.b16 %v428, %v424
        %v489 = vpack.c.b16 %v433, %v429
        %v490 = vpack.c.b16 %v434, %v430
        %v491 = vpack.c.b16 %v435, %v431
        %v492 = vpack.c.b16 %v436, %v432
        %v493 = vpack.c.b16 %v441, %v437
        %v494 = vpack.c.b16 %v442, %v438
        %v495 = vpack.c.b16 %v443, %v439
        %v496 = vpack.c.b16 %v444, %v440
        %v497 = vpack.c.b16 %v449, %v445
        %v498 = vpack.c.b16 %v450, %v446
        %v499 = vpack.c.b16 %v451, %v447
        %v500 = vpack.c.b16 %v452, %v448
        %v501 = vpack.c.b16 %v457, %v453
        %v502 = vpack.c.b16 %v458, %v454
        %v503 = vpack.c.b16 %v459, %v455
        %v504 = vpack.c.b16 %v460, %v456
        %v505 = vpack.c.b16 %v465, %v461
        %v506 = vpack.c.b16 %v466, %v462
        %v507 = vpack.c.b16 %v467, %v463
        %v508 = vpack.c.b16 %v468, %v464
        %v509 = vpack.c.b16 %v473, %v469
        %v510 = vpack.c.b16 %v474, %v470
        %v511 = vpack.c.b16 %v475, %v471
        %v512 = vpack.c.b16 %v476, %v472
        %v513 = vpack.c.b16 %v481, %v477
        %v514 = vpack.c.b16 %v482, %v478
        %v515 = vpack.c.b16 %v483, %v479
        %v516 = vpack.c.b16 %v484, %v480
        %549 = vmatpush.bf16.msra.mxu0 %v513
        %550 = vmatpush.bf16.msra.mxu0 %v509
        %551 = vmatpush.bf16.msra.mxu0 %v505
        %552 = vmatpush.bf16.msra.mxu0 %v501
        %553 = vmatpush.bf16.msra.mxu0 %v497
        %554 = vmatpush.bf16.msra.mxu0 %v493
        %555 = vmatpush.bf16.msra.mxu0 %v489
        %556 = vmatpush.bf16.msra.mxu0 %v485
        %557 = vmatmul.bf16.gmra.mxu0 %v387
        %v558 = vpop.f32.mrf.mxu0
        %v559 = vadd.f32 %v375, %v558
        %v560 = vpop.f32.mrf.mxu0
        %v561 = vadd.f32 %v375, %v560
        %562 = vdwg.mxu0
        %563 = vmatpush.bf16.msra.mxu0 %v514
        %564 = vmatpush.bf16.msra.mxu0 %v510
        %565 = vmatpush.bf16.msra.mxu0 %v506
        %566 = vmatpush.bf16.msra.mxu0 %v502
        %567 = vmatpush.bf16.msra.mxu0 %v498
        %568 = vmatpush.bf16.msra.mxu0 %v494
        %569 = vmatpush.bf16.msra.mxu0 %v490
        %570 = vmatpush.bf16.msra.mxu0 %v486
        %571 = vmatmul.bf16.gmra.mxu0 %v387
        %v572 = vpop.f32.mrf.mxu0
        %v573 = vadd.f32 %v376, %v572
        %v574 = vpop.f32.mrf.mxu0
        %v575 = vadd.f32 %v376, %v574
        %576 = vdwg.mxu0
        %577 = vmatpush.bf16.msra.mxu0 %v515
        %578 = vmatpush.bf16.msra.mxu0 %v511
        %579 = vmatpush.bf16.msra.mxu0 %v507
        %580 = vmatpush.bf16.msra.mxu0 %v503
        %581 = vmatpush.bf16.msra.mxu0 %v499
        %582 = vmatpush.bf16.msra.mxu0 %v495
        %583 = vmatpush.bf16.msra.mxu0 %v491
        %584 = vmatpush.bf16.msra.mxu0 %v487
        %585 = vmatmul.bf16.gmra.mxu0 %v387
        %v586 = vpop.f32.mrf.mxu0
        %v587 = vadd.f32 %v377, %v586
        %v588 = vpop.f32.mrf.mxu0
        %v589 = vadd.f32 %v377, %v588
        %590 = vdwg.mxu0
        %591 = vmatpush.bf16.msra.mxu0 %v516
        %592 = vmatpush.bf16.msra.mxu0 %v512
        %593 = vmatpush.bf16.msra.mxu0 %v508
        %594 = vmatpush.bf16.msra.mxu0 %v504
        %595 = vmatpush.bf16.msra.mxu0 %v500
        %596 = vmatpush.bf16.msra.mxu0 %v496
        %597 = vmatpush.bf16.msra.mxu0 %v492
        %598 = vmatpush.bf16.msra.mxu0 %v488
        %599 = vmatmul.bf16.gmra.mxu0 %v387
        %v600 = vpop.f32.mrf.mxu0
        %v601 = vadd.f32 %v378, %v600
        %v602 = vpop.f32.mrf.mxu0
        %v603 = vadd.f32 %v378, %v602
        %604 = vdwg.mxu0
        %v605 = vmax.f32 %v559, 0.0
        %v606 = vmax.f32 %v573, 0.0
        %v607 = vmax.f32 %v587, 0.0
        %v608 = vmax.f32 %v601, 0.0
        %v609 = vmax.f32 %v561, 0.0
        %v610 = vmax.f32 %v575, 0.0
        %v611 = vmax.f32 %v589, 0.0
        %v612 = vmax.f32 %v603, 0.0
        %v613 = vld [vmem:[%s327] sm:$0xff]
        %v614 = vld [vmem:[%s327 + $0x8] sm:$0xff]
        %v615 = vpack.c.bf16 %v609, %v605
        %v616 = vpack.c.bf16 %v610, %v606
        %v617 = vpack.c.bf16 %v611, %v607
        %v618 = vpack.c.bf16 %v612, %v608
        %v619 = vld [vmem:[#allocation8] sm:$0xf]
        %v620 = vld [vmem:[#allocation8 + $0x4] sm:$0xf]
        %v621 = vld [vmem:[#allocation8 + $0x8] sm:$0xf]
        %v622 = vld [vmem:[#allocation8 + $0xc] sm:$0xf]
        %v623 = vld [vmem:[#allocation8 + $0x10] sm:$0xf]
        %v624 = vld [vmem:[#allocation8 + $0x14] sm:$0xf]
        %v625 = vld [vmem:[#allocation8 + $0x18] sm:$0xf]
        %v626 = vld [vmem:[#allocation8 + $0x1c] sm:$0xf]
        %v627 = vld [vmem:[#allocation8 + $0x20] sm:$0xf]
        %v628 = vld [vmem:[#allocation8 + $0x24] sm:$0xf]
        %v629 = vld [vmem:[#allocation8 + $0x28] sm:$0xf]
        %v630 = vld [vmem:[#allocation8 + $0x2c] sm:$0xf]
        %v631 = vld [vmem:[#allocation8 + $0x30] sm:$0xf]
        %v632 = vld [vmem:[#allocation8 + $0x34] sm:$0xf]
        %v633 = vld [vmem:[#allocation8 + $0x38] sm:$0xf]
        %v634 = vld [vmem:[#allocation8 + $0x3c] sm:$0xf]
        %v635 = vld [vmem:[#allocation8 + $0x40] sm:$0xf]
        %v636 = vld [vmem:[#allocation8 + $0x44] sm:$0xf]
        %v637 = vld [vmem:[#allocation8 + $0x48] sm:$0xf]
        %v638 = vld [vmem:[#allocation8 + $0x4c] sm:$0xf]
        %v639 = vld [vmem:[#allocation8 + $0x50] sm:$0xf]
        %v640 = vld [vmem:[#allocation8 + $0x54] sm:$0xf]
        %v641 = vld [vmem:[#allocation8 + $0x58] sm:$0xf]
        %v642 = vld [vmem:[#allocation8 + $0x5c] sm:$0xf]
        %v643 = vld [vmem:[#allocation8 + $0x60] sm:$0xf]
        %v644 = vld [vmem:[#allocation8 + $0x64] sm:$0xf]
        %v645 = vld [vmem:[#allocation8 + $0x68] sm:$0xf]
        %v646 = vld [vmem:[#allocation8 + $0x6c] sm:$0xf]
        %v647 = vld [vmem:[#allocation8 + $0x70] sm:$0xf]
        %v648 = vld [vmem:[#allocation8 + $0x74] sm:$0xf]
        %v649 = vld [vmem:[#allocation8 + $0x78] sm:$0xf]
        %v650 = vld [vmem:[#allocation8 + $0x7c] sm:$0xf]
        %v651 = vld [vmem:[#allocation8 + $0x80] sm:$0xf]
        %v652 = vld [vmem:[#allocation8 + $0x84] sm:$0xf]
        %v653 = vld [vmem:[#allocation8 + $0x88] sm:$0xf]
        %v654 = vld [vmem:[#allocation8 + $0x8c] sm:$0xf]
        %v655 = vld [vmem:[#allocation8 + $0x90] sm:$0xf]
        %v656 = vld [vmem:[#allocation8 + $0x94] sm:$0xf]
        %v657 = vld [vmem:[#allocation8 + $0x98] sm:$0xf]
        %v658 = vld [vmem:[#allocation8 + $0x9c] sm:$0xf]
        %v659 = vld [vmem:[#allocation8 + $0xa0] sm:$0xf]
        %v660 = vld [vmem:[#allocation8 + $0xa4] sm:$0xf]
        %v661 = vld [vmem:[#allocation8 + $0xa8] sm:$0xf]
        %v662 = vld [vmem:[#allocation8 + $0xac] sm:$0xf]
        %v663 = vld [vmem:[#allocation8 + $0xb0] sm:$0xf]
        %v664 = vld [vmem:[#allocation8 + $0xb4] sm:$0xf]
        %v665 = vld [vmem:[#allocation8 + $0xb8] sm:$0xf]
        %v666 = vld [vmem:[#allocation8 + $0xbc] sm:$0xf]
        %v667 = vld [vmem:[#allocation8 + $0xc0] sm:$0xf]
        %v668 = vld [vmem:[#allocation8 + $0xc4] sm:$0xf]
        %v669 = vld [vmem:[#allocation8 + $0xc8] sm:$0xf]
        %v670 = vld [vmem:[#allocation8 + $0xcc] sm:$0xf]
        %v671 = vld [vmem:[#allocation8 + $0xd0] sm:$0xf]
        %v672 = vld [vmem:[#allocation8 + $0xd4] sm:$0xf]
        %v673 = vld [vmem:[#allocation8 + $0xd8] sm:$0xf]
        %v674 = vld [vmem:[#allocation8 + $0xdc] sm:$0xf]
        %v675 = vld [vmem:[#allocation8 + $0xe0] sm:$0xf]
        %v676 = vld [vmem:[#allocation8 + $0xe4] sm:$0xf]
        %v677 = vld [vmem:[#allocation8 + $0xe8] sm:$0xf]
        %v678 = vld [vmem:[#allocation8 + $0xec] sm:$0xf]
        %v679 = vld [vmem:[#allocation8 + $0xf0] sm:$0xf]
        %v680 = vld [vmem:[#allocation8 + $0xf4] sm:$0xf]
        %v681 = vld [vmem:[#allocation8 + $0xf8] sm:$0xf]
        %v682 = vld [vmem:[#allocation8 + $0xfc] sm:$0xf]
        %v747 = vunpack.c.l.b16 %v619
        %v748 = vunpack.c.l.b16 %v620
        %v749 = vunpack.c.l.b16 %v621
        %v750 = vunpack.c.l.b16 %v622
        %v751 = vunpack.c.l.b16 %v623
        %v752 = vunpack.c.l.b16 %v624
        %v753 = vunpack.c.l.b16 %v625
        %v754 = vunpack.c.l.b16 %v626
        %v755 = vunpack.c.l.b16 %v627
        %v756 = vunpack.c.l.b16 %v628
        %v757 = vunpack.c.l.b16 %v629
        %v758 = vunpack.c.l.b16 %v630
        %v759 = vunpack.c.l.b16 %v631
        %v760 = vunpack.c.l.b16 %v632
        %v761 = vunpack.c.l.b16 %v633
        %v762 = vunpack.c.l.b16 %v634
        %v763 = vunpack.c.l.b16 %v635
        %v764 = vunpack.c.l.b16 %v636
        %v765 = vunpack.c.l.b16 %v637
        %v766 = vunpack.c.l.b16 %v638
        %v767 = vunpack.c.l.b16 %v639
        %v768 = vunpack.c.l.b16 %v640
        %v769 = vunpack.c.l.b16 %v641
        %v770 = vunpack.c.l.b16 %v642
        %v771 = vunpack.c.l.b16 %v643
        %v772 = vunpack.c.l.b16 %v644
        %v773 = vunpack.c.l.b16 %v645
        %v774 = vunpack.c.l.b16 %v646
        %v775 = vunpack.c.l.b16 %v647
        %v776 = vunpack.c.l.b16 %v648
        %v777 = vunpack.c.l.b16 %v649
        %v778 = vunpack.c.l.b16 %v650
        %v779 = vunpack.c.l.b16 %v651
        %v780 = vunpack.c.l.b16 %v652
        %v781 = vunpack.c.l.b16 %v653
        %v782 = vunpack.c.l.b16 %v654
        %v783 = vunpack.c.l.b16 %v655
        %v784 = vunpack.c.l.b16 %v656
        %v785 = vunpack.c.l.b16 %v657
        %v786 = vunpack.c.l.b16 %v658
        %v787 = vunpack.c.l.b16 %v659
        %v788 = vunpack.c.l.b16 %v660
        %v789 = vunpack.c.l.b16 %v661
        %v790 = vunpack.c.l.b16 %v662
        %v791 = vunpack.c.l.b16 %v663
        %v792 = vunpack.c.l.b16 %v664
        %v793 = vunpack.c.l.b16 %v665
        %v794 = vunpack.c.l.b16 %v666
        %v795 = vunpack.c.l.b16 %v667
        %v796 = vunpack.c.l.b16 %v668
        %v797 = vunpack.c.l.b16 %v669
        %v798 = vunpack.c.l.b16 %v670
        %v799 = vunpack.c.l.b16 %v671
        %v800 = vunpack.c.l.b16 %v672
        %v801 = vunpack.c.l.b16 %v673
        %v802 = vunpack.c.l.b16 %v674
        %v803 = vunpack.c.l.b16 %v675
        %v804 = vunpack.c.l.b16 %v676
        %v805 = vunpack.c.l.b16 %v677
        %v806 = vunpack.c.l.b16 %v678
        %v807 = vunpack.c.l.b16 %v679
        %v808 = vunpack.c.l.b16 %v680
        %v809 = vunpack.c.l.b16 %v681
        %v810 = vunpack.c.l.b16 %v682
        %v811 = vpack.c.b16 %v748, %v747
        %v812 = vpack.c.b16 %v750, %v749
        %v813 = vpack.c.b16 %v752, %v751
        %v814 = vpack.c.b16 %v754, %v753
        %v815 = vpack.c.b16 %v756, %v755
        %v816 = vpack.c.b16 %v758, %v757
        %v817 = vpack.c.b16 %v760, %v759
        %v818 = vpack.c.b16 %v762, %v761
        %v819 = vpack.c.b16 %v764, %v763
        %v820 = vpack.c.b16 %v766, %v765
        %v821 = vpack.c.b16 %v768, %v767
        %v822 = vpack.c.b16 %v770, %v769
        %v823 = vpack.c.b16 %v772, %v771
        %v824 = vpack.c.b16 %v774, %v773
        %v825 = vpack.c.b16 %v776, %v775
        %v826 = vpack.c.b16 %v778, %v777
        %v827 = vpack.c.b16 %v780, %v779
        %v828 = vpack.c.b16 %v782, %v781
        %v829 = vpack.c.b16 %v784, %v783
        %v830 = vpack.c.b16 %v786, %v785
        %v831 = vpack.c.b16 %v788, %v787
        %v832 = vpack.c.b16 %v790, %v789
        %v833 = vpack.c.b16 %v792, %v791
        %v834 = vpack.c.b16 %v794, %v793
        %v835 = vpack.c.b16 %v796, %v795
        %v836 = vpack.c.b16 %v798, %v797
        %v837 = vpack.c.b16 %v800, %v799
        %v838 = vpack.c.b16 %v802, %v801
        %v839 = vpack.c.b16 %v804, %v803
        %v840 = vpack.c.b16 %v806, %v805
        %v841 = vpack.c.b16 %v808, %v807
        %v842 = vpack.c.b16 %v810, %v809
        %875 = vmatpush.bf16.msra.mxu0 %v818
        %876 = vmatpush.bf16.msra.mxu0 %v817
        %877 = vmatpush.bf16.msra.mxu0 %v816
        %878 = vmatpush.bf16.msra.mxu0 %v815
        %879 = vmatpush.bf16.msra.mxu0 %v814
        %880 = vmatpush.bf16.msra.mxu0 %v813
        %881 = vmatpush.bf16.msra.mxu0 %v812
        %882 = vmatpush.bf16.msra.mxu0 %v811
        %883 = vmatmul.bf16.gmra.mxu0 %v615
        %v884 = vpop.f32.mrf.mxu0
        %v885 = vadd.f32 0.0, %v884
        %v886 = vpop.f32.mrf.mxu0
        %v887 = vadd.f32 0.0, %v886
        %888 = vdwg.mxu0
        %889 = vmatpush.bf16.msra.mxu0 %v826
        %890 = vmatpush.bf16.msra.mxu0 %v825
        %891 = vmatpush.bf16.msra.mxu0 %v824
        %892 = vmatpush.bf16.msra.mxu0 %v823
        %893 = vmatpush.bf16.msra.mxu0 %v822
        %894 = vmatpush.bf16.msra.mxu0 %v821
        %895 = vmatpush.bf16.msra.mxu0 %v820
        %896 = vmatpush.bf16.msra.mxu0 %v819
        %897 = vmatmul.bf16.gmra.mxu0 %v616
        %v898 = vpop.f32.mrf.mxu0
        %v899 = vadd.f32 %v885, %v898
        %v900 = vpop.f32.mrf.mxu0
        %v901 = vadd.f32 %v887, %v900
        %902 = vdwg.mxu0
        %903 = vmatpush.bf16.msra.mxu0 %v834
        %904 = vmatpush.bf16.msra.mxu0 %v833
        %905 = vmatpush.bf16.msra.mxu0 %v832
        %906 = vmatpush.bf16.msra.mxu0 %v831
        %907 = vmatpush.bf16.msra.mxu0 %v830
        %908 = vmatpush.bf16.msra.mxu0 %v829
        %909 = vmatpush.bf16.msra.mxu0 %v828
        %910 = vmatpush.bf16.msra.mxu0 %v827
        %911 = vmatmul.bf16.gmra.mxu0 %v617
        %v912 = vpop.f32.mrf.mxu0
        %v913 = vadd.f32 %v899, %v912
        %v914 = vpop.f32.mrf.mxu0
        %v915 = vadd.f32 %v901, %v914
        %916 = vdwg.mxu0
        %917 = vmatpush.bf16.msra.mxu0 %v842
        %918 = vmatpush.bf16.msra.mxu0 %v841
        %919 = vmatpush.bf16.msra.mxu0 %v840
        %920 = vmatpush.bf16.msra.mxu0 %v839
        %921 = vmatpush.bf16.msra.mxu0 %v838
        %922 = vmatpush.bf16.msra.mxu0 %v837
        %923 = vmatpush.bf16.msra.mxu0 %v836
        %924 = vmatpush.bf16.msra.mxu0 %v835
        %925 = vmatmul.bf16.gmra.mxu0 %v618
        %v926 = vpop.f32.mrf.mxu0
        %v927 = vadd.f32 %v913, %v926
        %v928 = vpop.f32.mrf.mxu0
        %v929 = vadd.f32 %v915, %v928
        %930 = vdwg.mxu0
        %v931 = vadd.f32 %v613, %v927
        %v932 = vadd.f32 %v614, %v929
        %933 = vst [vmem:[%s327] sm:$0xff] %v931
        %934 = vst [vmem:[%s327 + $0x8] sm:$0xff] %v932
        // Predicated region
        $region61: #{tpu_custom_call.1} parent=39 // pred_check
          %p935 = pneg %p333
        $region62: #{tpu_custom_call.1} parent=39 // pred_check_branch
          %937 = sbr.rel (%p935) target = $region64
        $region63: #{tpu_custom_call.1} parent=39 // pred_region
          %v938 = vld [vmem:[%s327] sm:$0xff]
          %v939 = vld [vmem:[%s327 + $0x8] sm:$0xff]
          %v940 = vld [vmem:[%s4] sm:$0x1]
          %v942 = vperm.slane %v940, 0
          %v944 = vadd.f32 %v938, %v942
          %v945 = vadd.f32 %v939, %v942
          %946 = vst [vmem:[%s327] sm:$0xff] %v944
          %947 = vst [vmem:[%s327 + $0x8] sm:$0xff] %v945
        $region64: #{tpu_custom_call.1} parent=39 // pred_fallthru
          _
        %s948 = sand.u32 %s169, 1
        %s949 = scalar_lea.sflag [#allocation4], %s948
        %s950 = sand.u32 %s169, 1
        %s951 = smul.addr %s950, 16
        %s952 = scalar_lea.vmem [#allocation10], %s951
        // Predicated region
        $region65: #{tpu_custom_call.1} parent=39 // pred_check
          %p953 = pneg %p179
        $region66: #{tpu_custom_call.1} parent=39 // pred_check_branch
          %955 = sbr.rel (%p953) target = $region68
        $region67: #{tpu_custom_call.1} parent=39 // pred_region
          %s956 = smul.u32 2, %s28
          %958 = vsyncadd %s949, 0
          %s959 = smul.addr %s956, 8
          %s960 = scalar_lea.hbm %s5, %s959
          %s961 = sshll.u32 %s952, 4
          %s962 = int_to_ptr.vmem [resolvable:$true] %s961
          %s963 = sshll.u32 %s960, 4
          %s964 = int_to_ptr.hbm [resolvable:$true] %s963
          %969 = dma.vmem_to_hbm [thread:$0]  %s962, 256, %s964, %s949, 128, 128, 8
        $region68: #{tpu_custom_call.1} parent=39 // pred_fallthru
          _
      $region40: #{tpu_custom_call.1} parent=5 // pred_fallthru
        _
      %p970 = scmp.le.s32.totalorder 2, %s19
      // Predicated region
      $region69: #{tpu_custom_call.1} parent=5 // pred_check
        %p971 = pneg %p970
      $region70: #{tpu_custom_call.1} parent=5 // pred_check_branch
        %973 = sbr.rel (%p971) target = $region72
      $region71: #{tpu_custom_call.1} parent=5 // pred_region
        %s974 = ssub.s32 %s19, 2
        // Predicated region
        $region73: #{tpu_custom_call.1} parent=71 // pred_check
          %p975 = pneg %p185
        $region74: #{tpu_custom_call.1} parent=71 // pred_check_branch
          %977 = sbr.rel (%p975) target = $region76
        $region75: #{tpu_custom_call.1} parent=71 // pred_region
          %s978 = sand.u32 %s170, 1
          %s979 = scalar_lea.sflag [#allocation4], %s978
          %s980 = sand.u32 %s170, 1
          %s981 = smul.addr %s980, 16
          %s982 = scalar_lea.vmem [#allocation10], %s981
          %984 = dma.done %s979, 256
        $region76: #{tpu_custom_call.1} parent=71 // pred_fallthru
          _
      $region72: #{tpu_custom_call.1} parent=5 // pred_fallthru
        _
    $region6: #{tpu_custom_call.1} parent=1 // loop_footer
      %s23 = sadd.s32 1, %s19
    $region7: #{tpu_custom_call.1} parent=1 // loop_footer_branch
      %18 = sbr.rel target = $region3
    $region8: #{tpu_custom_call.1} parent=1 // loop_exit
      _
    %985 = vsyncpa [#allocation3], 1
    %s986 = scalar_lea.sflag [#allocation3], 1
    %987 = vsyncpa %s986, 1
    %988 = vsyncpa [#allocation6], 1
    %989 = vsyncpa [#allocation9], 1
    %990 = vsyncpa [#allocation4], 1
    %s991 = scalar_lea.sflag [#allocation4], 1
    %992 = vsyncpa %s991, 1

</llo_original>
